<compile_context>
chip_gen: v6e
topology: v6e:2x2x1
jax: 0.10.0
libtpu: 0.0.40
codegen_flags: <defaults>
</compile_context>

<pallas_src>
import jax
import jax.numpy as jnp
from jax.experimental import pallas as pl
from jax.experimental.pallas import tpu as pltpu


# --------------------------------------------------------------------------
# helpers
# --------------------------------------------------------------------------
def _round_up(x, m):
    return ((x + m - 1) // m) * m


def _pad2(a, rows, cols):
    pr = rows - a.shape[0]
    pc = cols - a.shape[1]
    if pr == 0 and pc == 0:
        return a
    return jnp.pad(a, ((0, pr), (0, pc)))


def _vmem_budget_bytes():
    """Per-generation VMEM budget (leave headroom for Mosaic internals)."""
    try:
        cap = int(pltpu.get_tpu_info().vmem_capacity_bytes)
    except Exception:
        cap = 64 * 1024 * 1024  # conservative default (v7x physical)
    return max(32 * 1024 * 1024, min(cap - 16 * 1024 * 1024, 100 * 1024 * 1024))


_ROW_TILE_CANDIDATES = (2048, 1024, 512, 256, 128, 64, 32, 16, 8)


def _pick_row_tile(n, f_out_p, resident_bytes, adj_itemsize, budget_bytes):
    """Largest row tile whose double-buffered streams + resident data fit VMEM."""

    def vmem_cost(tm):
        return (resident_bytes
                + 2 * tm * n * adj_itemsize      # streamed adj row tile (x2 buffers)
                + 2 * tm * f_out_p * 4)          # streamed f32 output tile (x2 buffers)

    if vmem_cost(n) <= budget_bytes:
        return n  # whole adjacency resident: single grid step
    for tm in _ROW_TILE_CANDIDATES:
        if tm < n and vmem_cost(tm) <= budget_bytes:
            return tm
    # TODO(synk): needs a K-tiled multi-kernel split for graphs this large.
    return 8


# --------------------------------------------------------------------------
# kernels (one grid axis = output row tiles; everything else VMEM-resident)
# --------------------------------------------------------------------------
def _gcn_agg_first_kernel(x_ref, w_ref, b_ref, adj_ref, o_ref):
    # out_tile = (adj_tile @ x) @ W + b      (used when F_out > F_in)
    a = adj_ref[...].astype(jnp.bfloat16)           # in-kernel cast of the f32 HBM stream
    agg = jnp.dot(a, x_ref[...], preferred_element_type=jnp.float32)
    out = jnp.dot(agg.astype(jnp.bfloat16), w_ref[...],
                  preferred_element_type=jnp.float32)
    o_ref[...] = (out + b_ref[...]).astype(o_ref.dtype)


def _gcn_support_first_kernel(x_ref, w_ref, b_ref, adj_ref, o_ref, s_ref):
    # step 0: support = x @ W, kept resident in VMEM scratch for all row tiles.
    @pl.when(pl.program_id(0) == 0)
    def _():
        s_ref[...] = jnp.dot(
            x_ref[...], w_ref[...], preferred_element_type=jnp.float32
        ).astype(s_ref.dtype)

    a = adj_ref[...].astype(jnp.bfloat16)           # in-kernel cast of the f32 HBM stream
    out = jnp.dot(a, s_ref[...], preferred_element_type=jnp.float32)
    o_ref[...] = (out + b_ref[...]).astype(o_ref.dtype)


# --------------------------------------------------------------------------
# wrapper
# --------------------------------------------------------------------------
def gcn_layer(x, adj_norm, weight, bias=None, *, row_tile=None):
    """Pallas implementation of GCNLayer.forward.

    x:        [N, F_in]      float32
    adj_norm: [N, N]         float32 (or bf16 if pre-cast once for reuse)
    weight:   [F_in, F_out]  float32
    bias:     [F_out] float32 or None
    returns:  [N, F_out]     float32  (== adj_norm @ (x @ weight) + bias)

    row_tile: optional override of the streamed adjacency row-tile size
              (multiple of 8, or == N); mainly for testing / tuning.
    """
    x = jnp.asarray(x, jnp.float32)
    weight = jnp.asarray(weight, jnp.float32)
    adj_norm = jnp.asarray(adj_norm)
    if adj_norm.dtype != jnp.bfloat16:              # keep a pre-cast bf16 graph as-is
        adj_norm = adj_norm.astype(jnp.float32)

    N, F_in = x.shape
    F_in_w, F_out = weight.shape
    assert F_in_w == F_in and adj_norm.shape == (N, N)

    f_out_p = _round_up(F_out, 128)                 # lane-dense output columns
    agg_first = F_out > F_in                        # association: (adj@x)@W if output wider

    # Small operands: cast / pad once in the wrapper (O(N*F), not O(N^2)).
    x_bf = x.astype(jnp.bfloat16)
    w_p = _pad2(weight, F_in, f_out_p).astype(jnp.bfloat16)
    if bias is None:
        # TODO(synk): no-bias path still adds a zero row (one VPU add per tile).
        bias2d = jnp.zeros((1, f_out_p), jnp.float32)
    else:
        bias2d = _pad2(jnp.asarray(bias, jnp.float32).reshape(1, F_out), 1, f_out_p)

    adj_itemsize = jnp.dtype(adj_norm.dtype).itemsize
    budget = _vmem_budget_bytes()

    # Resident VMEM (conservatively x2 buffers for constant-index input blocks).
    resident = 2 * (x_bf.size * 2 + w_p.size * 2 + bias2d.size * 4)
    if not agg_first:
        resident += N * f_out_p * 2                 # support scratch (bf16, 1 buffer)

    if row_tile is not None:
        assert row_tile == N or row_tile % 8 == 0
        tm = row_tile
    else:
        tm = _pick_row_tile(N, f_out_p, resident, adj_itemsize, budget)

    m_p = _round_up(N, tm)                          # output rows (divisible by tm)
    grid = (m_p // tm,)

    in_specs = [
        pl.BlockSpec((N, F_in), lambda i: (0, 0)),        # x        (resident)
        pl.BlockSpec((F_in, f_out_p), lambda i: (0, 0)),  # W        (resident)
        pl.BlockSpec((1, f_out_p), lambda i: (0, 0)),     # bias     (resident)
        pl.BlockSpec((tm, N), lambda i: (i, 0)),          # adj tile (streamed, stored dtype)
    ]
    out_specs = pl.BlockSpec((tm, f_out_p), lambda i: (i, 0))
    out_shape = jax.ShapeDtypeStruct((m_p, f_out_p), jnp.float32)

    if agg_first:
        kernel = _gcn_agg_first_kernel
        scratch_shapes = []
        # Row tiles fully independent -> shard across TensorCores on v7x.
        semantics = ("parallel",)
        flops = 2 * m_p * N * F_in + 2 * m_p * F_in * f_out_p
    else:
        kernel = _gcn_support_first_kernel
        scratch_shapes = [pltpu.VMEM((N, f_out_p), jnp.bfloat16)]
        # Step 0 writes the support scratch used by all later tiles, so this
        # axis must run sequentially (no loss on v5e/v6e: single TensorCore;
        # on v7x the kernel is HBM-bound on adj anyway).
        semantics = ("arbitrary",)
        flops = 2 * N * F_in * f_out_p + 2 * m_p * N * f_out_p

    bytes_accessed = (N * N * adj_itemsize + x_bf.size * 2 + w_p.size * 2
                      + bias2d.size * 4 + m_p * f_out_p * 4)

    out_p = pl.pallas_call(
        kernel,
        out_shape=out_shape,
        grid=grid,
        in_specs=in_specs,
        out_specs=out_specs,
        scratch_shapes=scratch_shapes,
        compiler_params=pltpu.CompilerParams(
            dimension_semantics=semantics,
            vmem_limit_bytes=int(budget),
        ),
        cost_estimate=pl.CostEstimate(
            flops=int(flops),
            transcendentals=0,
            bytes_accessed=int(bytes_accessed),
        ),
    )(x_bf, w_p, bias2d, adj_norm)

    return out_p[:N, :F_out]


# --------------------------------------------------------------------------
# references & test
# --------------------------------------------------------------------------
def xavier_uniform(key, shape, dtype=jnp.float32):
    fan_in, fan_out = shape
    bound = jnp.sqrt(6.0 / (fan_in + fan_out))
    return jax.random.uniform(key, shape, dtype=dtype, minval=-bound, maxval=bound)


def _reference_f32(x, adj, w, b):
    out = adj @ (x @ w)
    if b is not None:
        out = out + b[None, :]
    return out


def _reference_matched(x, adj, w, b, agg_first):
    # Mirrors the kernel's precision and association order.
    bf = jnp.bfloat16
    if agg_first:
        t = jnp.dot(adj.astype(bf), x.astype(bf), preferred_element_type=jnp.float32)
        out = jnp.dot(t.astype(bf), w.astype(bf), preferred_element_type=jnp.float32)
    else:
        s = jnp.dot(x.astype(bf), w.astype(bf),
                    preferred_element_type=jnp.float32).astype(bf)
        out = jnp.dot(adj.astype(bf), s, preferred_element_type=jnp.float32)
    if b is not None:
        out = out + b[None, :]
    return out


if __name__ == "__main__":
    key = jax.random.PRNGKey(0)

    def make_case(case_key, n, f_in, f_out, with_bias):
        k_x, k_adj, k_w, k_b = jax.random.split(case_key, 4)
        x = jax.random.normal(k_x, (n, f_in), dtype=jnp.float32)
        # Symmetric normalized adjacency  D^-1/2 (A + I) D^-1/2.
        a = (jax.random.uniform(k_adj, (n, n)) > 0.7).astype(jnp.float32)
        a = jnp.maximum(a, a.T) + jnp.eye(n, dtype=jnp.float32)
        d_inv_sqrt = 1.0 / jnp.sqrt(jnp.sum(a, axis=1))
        adj = d_inv_sqrt[:, None] * a * d_inv_sqrt[None, :]
        w = xavier_uniform(k_w, (f_in, f_out))
        b = 0.1 * jax.random.normal(k_b, (f_out,), jnp.float32) if with_bias else None
        return x, adj, w, b

    keys = jax.random.split(key, 5)
    cases = [
        (make_case(keys[0], 16, 32, 8, False), {}),                   # tiny, no bias
        (make_case(keys[1], 300, 64, 16, True), {}),                  # unaligned N, single step
        (make_case(keys[2], 300, 16, 64, True), {}),                  # F_out > F_in -> (adj@x)@W
        (make_case(keys[3], 512, 96, 32, True), {"row_tile": 128}),   # multi-tile grid, support scratch
        (make_case(keys[4], 384, 32, 160, True), {"row_tile": 128}),  # multi-tile grid, agg-first
    ]

    for idx, ((x, adj, w, b), kw) in enumerate(cases):
        out = jax.block_until_ready(gcn_layer(x, adj, w, b, **kw))
        assert out.shape == (x.shape[0], w.shape[1])
        agg_first = w.shape[1] > w.shape[0]
        ref_m = _reference_matched(x, adj, w, b, agg_first)
        ref_f = _reference_f32(x, adj, w, b)
        # Tight check vs. the precision-matched reference ...
        assert jnp.allclose(out, ref_m, atol=2e-3, rtol=2e-3), f"case {idx}: matched-ref mismatch"
        # ... and a loose check vs. the pure-fp32 reference (bf16 quantization).
        assert jnp.allclose(out, ref_f, atol=5e-2, rtol=5e-2), f"case {idx}: fp32-ref mismatch"

    # Amortized path: adjacency pre-cast to bf16 once outside (graph reused across layers).
    (x, adj, w, b), _ = cases[1]
    out_pre = jax.block_until_ready(gcn_layer(x, adj.astype(jnp.bfloat16), w, b))
    assert jnp.allclose(out_pre, _reference_matched(x, adj, w, b, False),
                        atol=2e-3, rtol=2e-3), "pre-cast adj mismatch"

    print("KERNEL_OK")
</pallas_src>

<mosaic_0001>
module attributes {stable_mosaic.version = 11 : i64} {
  func.func @_gcn_support_first_kernel(%arg0: i32, %arg1: memref<16x32xbf16, #tpu.memory_space<vmem>>, %arg2: memref<32x128xbf16, #tpu.memory_space<vmem>>, %arg3: memref<1x128xf32, #tpu.memory_space<vmem>>, %arg4: memref<16x16xf32, #tpu.memory_space<vmem>>, %arg5: memref<16x128xf32, #tpu.memory_space<vmem>>, %arg6: memref<16x128xbf16, #tpu.memory_space<vmem>>) attributes {dimension_semantics = [#tpu.dimension_semantics<arbitrary>], iteration_bounds = array<i64: 1>, scalar_prefetch = 0 : i64, scratch_operands = 1 : i64, tpu.core_type = #tpu.core_type<tc>, window_params = [{pipeline_mode = #tpu.pipeline_mode<synchronous>, transform_indices = @transform_0, window_bounds = array<i64: 16, 32>}, {pipeline_mode = #tpu.pipeline_mode<synchronous>, transform_indices = @transform_1, window_bounds = array<i64: 32, 128>}, {pipeline_mode = #tpu.pipeline_mode<synchronous>, transform_indices = @transform_2, window_bounds = array<i64: 1, 128>}, {transform_indices = @transform_3, window_bounds = array<i64: 16, 16>}, {transform_indices = @transform_4, window_bounds = array<i64: 16, 128>}]} {
    %c0_i32 = arith.constant 0 : i32
    %0 = arith.cmpi eq, %arg0, %c0_i32 : i32
    %1 = arith.extui %0 : i1 to i32
    %c0_i32_0 = arith.constant 0 : i32
    %2 = arith.cmpi ne, %1, %c0_i32_0 : i32
    scf.if %2 {
      %c0_8 = arith.constant 0 : index
      %c0_9 = arith.constant 0 : index
      %11 = vector.load %arg1[%c0_8, %c0_9] : memref<16x32xbf16, #tpu.memory_space<vmem>>, vector<16x32xbf16>
      %c0_10 = arith.constant 0 : index
      %c0_11 = arith.constant 0 : index
      %12 = vector.load %arg2[%c0_10, %c0_11] : memref<32x128xbf16, #tpu.memory_space<vmem>>, vector<32x128xbf16>
      %cst_12 = arith.constant dense<0.000000e+00> : vector<16x128xf32>
      %13 = tpu.matmul %11, %12, %cst_12 {dimension_numbers = #tpu.dot_dimension_numbers<[1], [0], [0], [1], [0, 0, 1, 1], [], []>} : vector<16x32xbf16>, vector<32x128xbf16>, vector<16x128xf32> -> vector<16x128xf32>
      %14 = arith.truncf %13 : vector<16x128xf32> to vector<16x128xbf16>
      %c0_13 = arith.constant 0 : index
      %c0_14 = arith.constant 0 : index
      %15 = vector.load %arg6[%c0_13, %c0_14] : memref<16x128xbf16, #tpu.memory_space<vmem>>, vector<16x128xbf16>
      tpu.vector_store %arg6[%c0_13, %c0_14], %14 {strides = array<i32>} : memref<16x128xbf16, #tpu.memory_space<vmem>>, vector<16x128xbf16>,
    } else {
    }
    %c0 = arith.constant 0 : index
    %c0_1 = arith.constant 0 : index
    %3 = vector.load %arg4[%c0, %c0_1] : memref<16x16xf32, #tpu.memory_space<vmem>>, vector<16x16xf32>
    %4 = arith.truncf %3 : vector<16x16xf32> to vector<16x16xbf16>
    %c0_2 = arith.constant 0 : index
    %c0_3 = arith.constant 0 : index
    %5 = vector.load %arg6[%c0_2, %c0_3] : memref<16x128xbf16, #tpu.memory_space<vmem>>, vector<16x128xbf16>
    %cst = arith.constant dense<0.000000e+00> : vector<16x128xf32>
    %6 = tpu.matmul %4, %5, %cst {dimension_numbers = #tpu.dot_dimension_numbers<[1], [0], [0], [1], [0, 0, 1, 1], [], []>} : vector<16x16xbf16>, vector<16x128xbf16>, vector<16x128xf32> -> vector<16x128xf32>
    %c0_4 = arith.constant 0 : index
    %c0_5 = arith.constant 0 : index
    %7 = vector.load %arg3[%c0_4, %c0_5] : memref<1x128xf32, #tpu.memory_space<vmem>>, vector<1x128xf32>
    %8 = vector.broadcast %7 : vector<1x128xf32> to vector<16x128xf32>
    %9 = arith.addf %6, %8 : vector<16x128xf32>
    %c0_6 = arith.constant 0 : index
    %c0_7 = arith.constant 0 : index
    %10 = vector.load %arg5[%c0_6, %c0_7] : memref<16x128xf32, #tpu.memory_space<vmem>>, vector<16x128xf32>
    tpu.vector_store %arg5[%c0_6, %c0_7], %9 {strides = array<i32>} : memref<16x128xf32, #tpu.memory_space<vmem>>, vector<16x128xf32>,
    return
  }
  func.func @transform_0(%arg0: i32) -> (i32, i32) {
    %c0_i32 = arith.constant 0 : i32
    %c0_i32_0 = arith.constant 0 : i32
    %c0_i32_1 = arith.constant 0 : i32
    return %c0_i32, %c0_i32_0 : i32, i32
  }
  func.func @transform_1(%arg0: i32) -> (i32, i32) {
    %c0_i32 = arith.constant 0 : i32
    %c0_i32_0 = arith.constant 0 : i32
    %c0_i32_1 = arith.constant 0 : i32
    return %c0_i32, %c0_i32_0 : i32, i32
  }
  func.func @transform_2(%arg0: i32) -> (i32, i32) {
    %c0_i32 = arith.constant 0 : i32
    %c0_i32_0 = arith.constant 0 : i32
    %c0_i32_1 = arith.constant 0 : i32
    return %c0_i32, %c0_i32_0 : i32, i32
  }
  func.func @transform_3(%arg0: i32) -> (i32, i32) {
    %c0_i32 = arith.constant 0 : i32
    %c0_i32_0 = arith.constant 0 : i32
    return %arg0, %c0_i32 : i32, i32
  }
  func.func @transform_4(%arg0: i32) -> (i32, i32) {
    %c0_i32 = arith.constant 0 : i32
    %c0_i32_0 = arith.constant 0 : i32
    return %arg0, %c0_i32 : i32, i32
  }
}

</mosaic_0001>

<llo_original>
// kernel: tpu_custom_call.1
$region0: #{tpu_custom_call.1}
  #allocation0 [shape = 'u32[]', space=smem, size = 0x4, offset = 0x4, fixed_abs, tag = 'smem constant byte address 0x4 - core index']
  #allocation1 [shape = 'u32[144,128]{1,0:T(1,128)}', space=vmem, size = 0x12000, scoped, tag = 'internal scratch']
  #allocation2 [shape = 'bf16[16,128]{1,0:T(8,128)(2,1)}', space=vmem, size = 0x1000, scoped, tag = 'scratch operand']
  %s0 = inlined_call_operand.hbm [shape: bf16[16,32], index: 0, kind: input, shape index: {}]
  %s1 = inlined_call_operand.hbm [shape: bf16[32,128], index: 1, kind: input, shape index: {}]
  %s2 = inlined_call_operand.vmem [shape: f32[1,128], index: 2, kind: input, shape index: {}]
  %s3 = inlined_call_operand.hbm [shape: f32[16,16], index: 3, kind: input, shape index: {}]
  %s4 = inlined_call_operand.hbm [shape: f32[16,128], index: 4, kind: output, shape index: {}]
  %s5 = sld [smem:[#allocation0]]
  $region42: #{tpu_custom_call.1} parent=0
    _
  %s7 = ssub.s32 1, %s5
  %s8 = scalar_select 0, %s7, %s5
  $region1: #{tpu_custom_call.1} parent=0
    #allocation3 [shape = 'u8[4096]{0}', space=vmem, size = 0x1000, scoped, tag = 'input window, operand 0, single buffered']
    #allocation4 [shape = 's32[1]{0}', space=sflag, size = 0x4, scoped, tag = 'scoped memory for tpu_custom_call.1']
    #allocation5 [shape = 's32[1]{0}', space=sflag, size = 0x4, scoped, tag = 'scoped memory for tpu_custom_call.1']
    #allocation6 [shape = 'u8[8192]{0}', space=vmem, size = 0x2000, scoped, tag = 'input window, operand 1, single buffered']
    #allocation7 [shape = 's32[1]{0}', space=sflag, size = 0x4, scoped, tag = 'scoped memory for tpu_custom_call.1']
    #allocation8 [shape = 'u8[8192]{0}', space=vmem, size = 0x2000, scoped, tag = 'input window, operand 3, single buffered']
    #allocation9 [shape = 'u8[8192]{0}', space=vmem, size = 0x2000, scoped, tag = 'output window, operand 0, single buffered']
    %9 = vsyncpa [#allocation4], 0
    %10 = vsyncpa [#allocation7], 0
    %11 = vsyncpa [#allocation5], 0
    // Predicated region
    $region2: #{tpu_custom_call.1} parent=1 // pred_check
      _
    $region3: #{tpu_custom_call.1} parent=1 // pred_check_branch
      %13 = sbr.rel (0) target = $region5
    $region4: #{tpu_custom_call.1} parent=1 // pred_region
      %s15 = ssub.s32 128, 128
      %16 = vsyncadd [#allocation4], %s15
      %s17 = sshll.u32 [#allocation3], 4
      %s18 = int_to_ptr.vmem [resolvable:$true] %s17
      %23 = dma.hbm_to_vmem [thread:$0]  %s0, 128, %s18, [#allocation4], 64, 64, 4
    $region5: #{tpu_custom_call.1} parent=1 // pred_fallthru
      _
    // Predicated region
    $region6: #{tpu_custom_call.1} parent=1 // pred_check
      _
    $region7: #{tpu_custom_call.1} parent=1 // pred_check_branch
      %25 = sbr.rel (0) target = $region9
    $region8: #{tpu_custom_call.1} parent=1 // pred_region
      %s27 = ssub.s32 256, 256
      %28 = vsyncadd [#allocation7], %s27
      %s29 = sshll.u32 [#allocation6], 4
      %s30 = int_to_ptr.vmem [resolvable:$true] %s29
      %35 = dma.hbm_to_vmem [thread:$0]  %s1, 256, %s30, [#allocation7], 64, 64, 4
    $region9: #{tpu_custom_call.1} parent=1 // pred_fallthru
      _
    // Predicated region
    $region10: #{tpu_custom_call.1} parent=1 // pred_check
      _
    $region11: #{tpu_custom_call.1} parent=1 // pred_check_branch
      %37 = sbr.rel (0) target = $region13
    $region12: #{tpu_custom_call.1} parent=1 // pred_region
      _
    $region13: #{tpu_custom_call.1} parent=1 // pred_fallthru
      _
    // Predicated region
    $region14: #{tpu_custom_call.1} parent=1 // pred_check
      _
    $region15: #{tpu_custom_call.1} parent=1 // pred_check_branch
      %39 = sbr.rel (0) target = $region17
    $region16: #{tpu_custom_call.1} parent=1 // pred_region
      %s41 = ssub.s32 256, 256
      %42 = vsyncadd [#allocation7], %s41
      %s43 = sshll.u32 [#allocation8], 4
      %s44 = int_to_ptr.vmem [resolvable:$true] %s43
      %49 = dma.hbm_to_vmem [thread:$0]  %s3, 256, %s44, [#allocation7], 128, 128, 8
    $region17: #{tpu_custom_call.1} parent=1 // pred_fallthru
      _
    // Predicated region
    $region18: #{tpu_custom_call.1} parent=1 // pred_check
      _
    $region19: #{tpu_custom_call.1} parent=1 // pred_check_branch
      %51 = sbr.rel (0) target = $region21
    $region20: #{tpu_custom_call.1} parent=1 // pred_region
      %52 = dma.done [#allocation4], 128
    $region21: #{tpu_custom_call.1} parent=1 // pred_fallthru
      _
    // Predicated region
    $region22: #{tpu_custom_call.1} parent=1 // pred_check
      _
    $region23: #{tpu_custom_call.1} parent=1 // pred_check_branch
      %54 = sbr.rel (0) target = $region25
    $region24: #{tpu_custom_call.1} parent=1 // pred_region
      %55 = dma.done [#allocation7], 256
    $region25: #{tpu_custom_call.1} parent=1 // pred_fallthru
      _
    // Predicated region
    $region26: #{tpu_custom_call.1} parent=1 // pred_check
      _
    $region27: #{tpu_custom_call.1} parent=1 // pred_check_branch
      %57 = sbr.rel (0) target = $region29
    $region28: #{tpu_custom_call.1} parent=1 // pred_region
      %58 = dma.done [#allocation7], 256
    $region29: #{tpu_custom_call.1} parent=1 // pred_fallthru
      _
    %p60 = scmp.eq.s32.totalorder 0, 0
    // Predicated region
    $region30: #{tpu_custom_call.1} parent=1 // pred_check
      %p61 = pneg %p60
    $region31: #{tpu_custom_call.1} parent=1 // pred_check_branch
      %63 = sbr.rel (%p61) target = $region33
    $region32: #{tpu_custom_call.1} parent=1 // pred_region
      %v64 = vld [vmem:[#allocation3] sm:$0xf]
      %v65 = vld [vmem:[#allocation3 + $0x4] sm:$0xf]
      %v66 = vld [vmem:[#allocation6] sm:$0xf]
      %v67 = vld [vmem:[#allocation6 + $0x4] sm:$0xf]
      %v68 = vld [vmem:[#allocation6 + $0x8] sm:$0xf]
      %v69 = vld [vmem:[#allocation6 + $0xc] sm:$0xf]
      %v72 = vunpack.c.l.b16 %v64
      %v73 = vunpack.c.l.b16 %v65
      %v74 = vpack.c.b16 %v73, %v72
      %v79 = vunpack.c.l.b16 %v66
      %v80 = vunpack.c.l.b16 %v67
      %v81 = vunpack.c.l.b16 %v68
      %v82 = vunpack.c.l.b16 %v69
      %v83 = vpack.c.b16 %v80, %v79
      %v84 = vpack.c.b16 %v82, %v81
      %vm87 = vcmask 261120
      %v89 = vsel %vm87, %v74, 0
      %91 = vmatprep.subr.bf16.mxu0 0
      %92 = vmatpush1.bf16.msra.mxu0 0
      %93 = vmatprep.subr.bf16.mxu0 0
      %94 = vmatpush1.bf16.msra.mxu0 0
      %95 = vmatprep.subr.bf16.mxu0 0
      %96 = vmatpush1.bf16.msra.mxu0 0
      %97 = vmatprep.subr.bf16.mxu0 0
      %98 = vmatpush1.bf16.msra.mxu0 0
      %99 = vmatprep.subr.bf16.mxu0 0
      %100 = vmatpush1.bf16.msra.mxu0 0
      %101 = vmatprep.subr.bf16.mxu0 0
      %102 = vmatpush1.bf16.msra.mxu0 0
      %103 = vmatprep.subr.bf16.mxu0 0
      %104 = vmatpush1.bf16.msra.mxu0 %v84
      %105 = vmatprep.subr.bf16.mxu0 0
      %106 = vmatpush1.bf16.msra.mxu0 %v83
      %107 = vmatprep.subr.bf16.mxu0 0
      %108 = vmatpush2.bf16.msra.mxu0 0
      %109 = vmatprep.subr.bf16.mxu0 0
      %110 = vmatpush2.bf16.msra.mxu0 0
      %111 = vmatprep.subr.bf16.mxu0 0
      %112 = vmatpush2.bf16.msra.mxu0 0
      %113 = vmatprep.subr.bf16.mxu0 0
      %114 = vmatpush2.bf16.msra.mxu0 0
      %115 = vmatprep.subr.bf16.mxu0 0
      %116 = vmatpush2.bf16.msra.mxu0 0
      %117 = vmatprep.subr.bf16.mxu0 0
      %118 = vmatpush2.bf16.msra.mxu0 0
      %119 = vmatprep.subr.bf16.mxu0 0
      %120 = vmatpush2.bf16.msra.mxu0 0
      %121 = vmatprep.subr.bf16.mxu0 0
      %122 = vmatpush2.bf16.msra.mxu0 0
      %123 = vmatprep.mubr.bf16.mxu0 0
      %124 = vmatmul.mubr.bf16.gmra.mxu0 %v89
      %v125 = vpop.f32.mrf.mxu0
      %v126 = vadd.f32 0.0, %v125
      %v127 = vpop.f32.mrf.mxu0
      %v128 = vpop.f32.mrf.mxu0
      %v129 = vadd.f32 0.0, %v128
      %v130 = vpop.f32.mrf.mxu0
      %131 = vdwg.mxu0
      %v132 = vpack.c.bf16 %v129, %v126
      %v134 = vunpack.c.l.b16 %v132
      %v135 = vunpack.c.h.b16 %v132
      %v136 = vpack.c.b16 %v134, %v134
      %v137 = vpack.c.b16 %v135, %v135
      %140 = vst [vmem:[#allocation2] sm:$0xf] %v136
      %141 = vst [vmem:[#allocation2 + $0x4] sm:$0xf] %v137
    $region33: #{tpu_custom_call.1} parent=1 // pred_fallthru
      _
    %v142 = vld [vmem:[#allocation8] sm:$0xff]
    %v143 = vld [vmem:[#allocation8 + $0x8] sm:$0xff]
    %v144 = vpack.c.bf16 %v143, %v142
    %v145 = vld [vmem:[#allocation2] sm:$0xf]
    %v146 = vld [vmem:[#allocation2 + $0x4] sm:$0xf]
    %v147 = vld [vmem:[%s2] sm:$0x1]
    %v149 = vlaneseq
    %v150 = vshrl.u32 %v149, 7
    %v151 = vsub.s32 0, %v150
    %v152 = vrot.slane %v147, %v151
    %v156 = vunpack.c.l.b16 %v145
    %v157 = vunpack.c.l.b16 %v146
    %v158 = vpack.c.b16 %v157, %v156
    %vm160 = vcmask 130048
    %v162 = vsel %vm160, %v144, 0
    %164 = vmatprep.subr.bf16.mxu0 0
    %165 = vmatpush1.bf16.msra.mxu0 0
    %166 = vmatprep.subr.bf16.mxu0 0
    %167 = vmatpush1.bf16.msra.mxu0 0
    %168 = vmatprep.subr.bf16.mxu0 0
    %169 = vmatpush1.bf16.msra.mxu0 0
    %170 = vmatprep.subr.bf16.mxu0 0
    %171 = vmatpush1.bf16.msra.mxu0 0
    %172 = vmatprep.subr.bf16.mxu0 0
    %173 = vmatpush1.bf16.msra.mxu0 0
    %174 = vmatprep.subr.bf16.mxu0 0
    %175 = vmatpush1.bf16.msra.mxu0 0
    %176 = vmatprep.subr.bf16.mxu0 0
    %177 = vmatpush1.bf16.msra.mxu0 0
    %178 = vmatprep.subr.bf16.mxu0 0
    %179 = vmatpush1.bf16.msra.mxu0 %v158
    %180 = vmatprep.subr.bf16.mxu0 0
    %181 = vmatpush2.bf16.msra.mxu0 0
    %182 = vmatprep.subr.bf16.mxu0 0
    %183 = vmatpush2.bf16.msra.mxu0 0
    %184 = vmatprep.subr.bf16.mxu0 0
    %185 = vmatpush2.bf16.msra.mxu0 0
    %186 = vmatprep.subr.bf16.mxu0 0
    %187 = vmatpush2.bf16.msra.mxu0 0
    %188 = vmatprep.subr.bf16.mxu0 0
    %189 = vmatpush2.bf16.msra.mxu0 0
    %190 = vmatprep.subr.bf16.mxu0 0
    %191 = vmatpush2.bf16.msra.mxu0 0
    %192 = vmatprep.subr.bf16.mxu0 0
    %193 = vmatpush2.bf16.msra.mxu0 0
    %194 = vmatprep.subr.bf16.mxu0 0
    %195 = vmatpush2.bf16.msra.mxu0 0
    %196 = vmatprep.mubr.bf16.mxu0 0
    %197 = vmatmul.mubr.bf16.gmra.mxu0 %v162
    %v198 = vpop.f32.mrf.mxu0
    %v199 = vadd.f32 %v152, %v198
    %v200 = vpop.f32.mrf.mxu0
    %v201 = vpop.f32.mrf.mxu0
    %v202 = vadd.f32 %v152, %v201
    %v203 = vpop.f32.mrf.mxu0
    %204 = vdwg.mxu0
    %205 = vst [vmem:[#allocation9] sm:$0xff] %v199
    %206 = vst [vmem:[#allocation9 + $0x8] sm:$0xff] %v202
    // Predicated region
    $region34: #{tpu_custom_call.1} parent=1 // pred_check
      _
    $region35: #{tpu_custom_call.1} parent=1 // pred_check_branch
      %208 = sbr.rel (0) target = $region37
    $region36: #{tpu_custom_call.1} parent=1 // pred_region
      %s210 = ssub.s32 256, 256
      %211 = vsyncadd [#allocation5], %s210
      %s212 = sshll.u32 [#allocation9], 4
      %s213 = int_to_ptr.vmem [resolvable:$true] %s212
      %218 = dma.vmem_to_hbm [thread:$0]  %s213, 256, %s4, [#allocation5], 128, 128, 8
    $region37: #{tpu_custom_call.1} parent=1 // pred_fallthru
      _
    // Predicated region
    $region38: #{tpu_custom_call.1} parent=1 // pred_check
      _
    $region39: #{tpu_custom_call.1} parent=1 // pred_check_branch
      %220 = sbr.rel (0) target = $region41
    $region40: #{tpu_custom_call.1} parent=1 // pred_region
      %221 = dma.done [#allocation5], 256
    $region41: #{tpu_custom_call.1} parent=1 // pred_fallthru
      _
    %222 = vsyncpa [#allocation4], 1
    %223 = vsyncpa [#allocation7], 1
    %224 = vsyncpa [#allocation5], 1

</llo_original>
